<compile_context>
chip_gen: v7x
topology: tpu7x:2x2x1
jax: 0.10.0
libtpu: 0.0.40
codegen_flags: <defaults>
</compile_context>

<pallas_src>
import functools

import jax
import jax.numpy as jnp
from jax.experimental import pallas as pl
from jax.experimental.pallas import tpu as pltpu

# ---- "config" the PyTorch module reads from --------------------------------
CONFIG = {
    "testing": {
        "color_channel(s)": 1,
        "img_size": 16,
        "NUM_CLASS": 10,
    }
}

_BN_EPS = 1e-5
_LANE = 128

# Packed small-vector buffer layout: f32, shape (16, 256).
_ROW_G1, _ROW_BE1 = 0, 1    # fc1 BN gamma/beta, 64 real cols (padded to 128)
_ROW_G2, _ROW_BE2 = 2, 3    # fc2 BN gamma/beta, 128 cols
_ROW_G3, _ROW_BE3 = 4, 5    # fc3 BN gamma/beta, 256 cols
_ROW_G4, _ROW_BE4 = 6, 7    # fc4 BN gamma/beta, 128 cols
_ROW_B5 = 8                 # fc5 bias, NUM_CLASS real cols (padded to 128)


def _bn_relu(h, gamma, beta):
    """Training-mode BatchNorm1d (biased var) + ReLU, folded.

    var = E[h^2] - E[h]^2 lets the two XLU reductions issue back-to-back;
    scale = gamma*rsqrt(var+eps) and shift = beta - mean*scale fold the
    per-element path to a single FMA + max.
    """
    inv_b = 1.0 / h.shape[0]
    mean = jnp.sum(h, axis=0, keepdims=True) * inv_b
    mean_sq = jnp.sum(h * h, axis=0, keepdims=True) * inv_b
    var = mean_sq - mean * mean
    scale = gamma * jax.lax.rsqrt(var + _BN_EPS)      # rsqrt -> EUP slot
    shift = beta - mean * scale
    return jnp.maximum(h * scale + shift, 0.0)


def mlp_kernel(x_ref, w1_ref, w2_ref, w3_ref, w4_ref, w5_ref, vec_ref, o_ref):
    # x arrives f32; cast to bf16 here (no standalone XLA convert launch).
    x = x_ref[...].astype(jnp.bfloat16)

    # fc1 -> BN -> relu   (b1..b4 omitted: they cancel in training-mode BN)
    h = jnp.dot(x, w1_ref[...], preferred_element_type=jnp.float32)
    h = _bn_relu(h, vec_ref[_ROW_G1:_ROW_G1 + 1, 0:128],
                 vec_ref[_ROW_BE1:_ROW_BE1 + 1, 0:128])

    # fc2 -> BN -> relu
    h = jnp.dot(h.astype(jnp.bfloat16), w2_ref[...],
                preferred_element_type=jnp.float32)
    h = _bn_relu(h, vec_ref[_ROW_G2:_ROW_G2 + 1, 0:128],
                 vec_ref[_ROW_BE2:_ROW_BE2 + 1, 0:128])

    # fc3 -> BN -> relu
    h = jnp.dot(h.astype(jnp.bfloat16), w3_ref[...],
                preferred_element_type=jnp.float32)
    h = _bn_relu(h, vec_ref[_ROW_G3:_ROW_G3 + 1, 0:256],
                 vec_ref[_ROW_BE3:_ROW_BE3 + 1, 0:256])

    # fc4 -> BN -> relu
    h = jnp.dot(h.astype(jnp.bfloat16), w4_ref[...],
                preferred_element_type=jnp.float32)
    h = _bn_relu(h, vec_ref[_ROW_G4:_ROW_G4 + 1, 0:128],
                 vec_ref[_ROW_BE4:_ROW_BE4 + 1, 0:128])

    # fc5 (logits, bias kept; fc5batchnorm is dead code in the PyTorch module)
    o_ref[...] = (
        jnp.dot(h.astype(jnp.bfloat16), w5_ref[...],
                preferred_element_type=jnp.float32)
        + vec_ref[_ROW_B5:_ROW_B5 + 1, 0:128]
    )


def init_params(key, in_dim, num_class):
    """Deterministic parameter init (PyTorch-Linear-like uniform bounds)."""
    dims = [(in_dim, 64), (64, 128), (128, 256), (256, 128), (128, num_class)]
    params = {}
    keys = jax.random.split(key, 2 * len(dims))
    for i, (fan_in, fan_out) in enumerate(dims):
        bound = 1.0 / float(fan_in) ** 0.5
        # stored as (in, out) == PyTorch weight (out, in) transposed
        params[f"w{i+1}"] = jax.random.uniform(
            keys[2 * i], (fan_in, fan_out), jnp.float32, -bound, bound)
        params[f"b{i+1}"] = jax.random.uniform(
            keys[2 * i + 1], (1, fan_out), jnp.float32, -bound, bound)
    # BatchNorm affine params: fresh init gamma=1, beta=0 (only the 4 BNs used
    # in forward(); fc5batchnorm is dead code).
    for i, width in enumerate([64, 128, 256, 128]):
        params[f"g{i+1}"] = jnp.ones((1, width), jnp.float32)
        params[f"be{i+1}"] = jnp.zeros((1, width), jnp.float32)
    return params


def _pad_cols(a, target):
    pad = target - a.shape[-1]
    return a if pad == 0 else jnp.pad(a, ((0, 0), (0, pad)))


def _pad_rows(a, target):
    pad = target - a.shape[0]
    return a if pad == 0 else jnp.pad(a, ((0, pad), (0, 0)))


def prepare_params(params, num_class):
    """One-time formatting (lane padding + bf16 cast + vector packing).

    Runs once, off the per-call hot path.  Padded fc1 output columns stay
    exactly 0 (zero weight cols, gamma=beta=0) and the matching zero rows of
    w2 contribute nothing downstream; padded logits columns are sliced off
    after the kernel.
    """
    h1p = ((64 + _LANE - 1) // _LANE) * _LANE              # 64  -> 128
    ncp = ((num_class + _LANE - 1) // _LANE) * _LANE       # 10  -> 128
    assert ncp == 128, "kernel assumes num_class <= 128"

    w1 = _pad_cols(params["w1"], h1p).astype(jnp.bfloat16)
    w2 = _pad_rows(params["w2"], h1p).astype(jnp.bfloat16)
    w3 = params["w3"].astype(jnp.bfloat16)
    w4 = params["w4"].astype(jnp.bfloat16)
    w5 = _pad_cols(params["w5"], ncp).astype(jnp.bfloat16)

    vecs = jnp.zeros((16, 256), jnp.float32)
    vecs = vecs.at[_ROW_G1, :64].set(params["g1"][0])
    vecs = vecs.at[_ROW_BE1, :64].set(params["be1"][0])
    vecs = vecs.at[_ROW_G2, :128].set(params["g2"][0])
    vecs = vecs.at[_ROW_BE2, :128].set(params["be2"][0])
    vecs = vecs.at[_ROW_G3, :256].set(params["g3"][0])
    vecs = vecs.at[_ROW_BE3, :256].set(params["be3"][0])
    vecs = vecs.at[_ROW_G4, :128].set(params["g4"][0])
    vecs = vecs.at[_ROW_BE4, :128].set(params["be4"][0])
    vecs = vecs.at[_ROW_B5, :num_class].set(params["b5"][0])

    prep = {"w1": w1, "w2": w2, "w3": w3, "w4": w4, "w5": w5, "vecs": vecs}
    return jax.tree_util.tree_map(jax.block_until_ready,
                                  jax.tree_util.tree_map(jnp.asarray, prep))


@functools.partial(jax.jit, static_argnames=("num_class",))
def model_clf_forward(x_nchw, prep, *, num_class):
    b = x_nchw.shape[0]
    in_dim = x_nchw.shape[1] * x_nchw.shape[2] * x_nchw.shape[3]
    # X.view(-1, C*H*W) equivalent; stays f32 (free bitcast), bf16 cast in-kernel.
    x = x_nchw.reshape(b, in_dim)

    args = (x, prep["w1"], prep["w2"], prep["w3"], prep["w4"], prep["w5"],
            prep["vecs"])

    # Advisory scheduling hint (tiny, latency-bound kernel).
    flops = 2 * b * (in_dim * 64 + 64 * 128 + 128 * 256 + 256 * 128
                     + 128 * num_class)
    flops += 8 * b * (64 + 128 + 256 + 128)          # BN + ReLU elementwise
    transcendentals = 64 + 128 + 256 + 128           # one rsqrt per BN column
    bytes_accessed = (sum(int(a.size) * a.dtype.itemsize for a in args)
                      + b * 128 * 4)

    vmem_spec = pl.BlockSpec(memory_space=pltpu.MemorySpace.VMEM)
    out = pl.pallas_call(
        mlp_kernel,
        out_shape=jax.ShapeDtypeStruct((b, 128), jnp.float32),
        in_specs=[vmem_spec] * len(args),
        out_specs=vmem_spec,
        cost_estimate=pl.CostEstimate(
            flops=flops,
            transcendentals=transcendentals,
            bytes_accessed=bytes_accessed,
        ),
        # Right-sized: actual VMEM footprint is < 1 MiB.
        compiler_params=pltpu.CompilerParams(vmem_limit_bytes=2 * 1024 * 1024),
    )(*args)
    return out[:, :num_class]


def reference_forward(x_nchw, params, num_class):
    """Pure-JAX f32 reference matching the PyTorch forward (training-mode BN)."""
    b = x_nchw.shape[0]
    h = x_nchw.reshape(b, -1)
    for i in range(4):
        h = h @ params[f"w{i+1}"] + params[f"b{i+1}"]
        mu = jnp.mean(h, axis=0, keepdims=True)
        var = jnp.mean((h - mu) ** 2, axis=0, keepdims=True)
        h = (h - mu) * jax.lax.rsqrt(var + _BN_EPS) * params[f"g{i+1}"] \
            + params[f"be{i+1}"]
        h = jnp.maximum(h, 0.0)
    return h @ params["w5"] + params["b5"]


if __name__ == "__main__":
    cfg = CONFIG["testing"]
    C, S, NUM_CLASS = cfg["color_channel(s)"], cfg["img_size"], cfg["NUM_CLASS"]
    B = 8
    in_dim = C * S * S

    key = jax.random.PRNGKey(0)
    k_x, k_p = jax.random.split(key)
    x = jax.random.normal(k_x, (B, C, S, S), jnp.float32)  # NCHW, like PyTorch
    params = init_params(k_p, in_dim, NUM_CLASS)
    prep = prepare_params(params, NUM_CLASS)   # one-time, off the hot path

    out = model_clf_forward(x, prep, num_class=NUM_CLASS)
    out = jax.block_until_ready(out)
    assert out.shape == (B, NUM_CLASS), out.shape
    assert bool(jnp.all(jnp.isfinite(out)))

    # Loose tolerance: kernel uses bf16 MXU operands (f32 accumulation).
    ref = reference_forward(x, params, NUM_CLASS)
    assert jnp.allclose(out, ref, rtol=1e-1, atol=1e-1), (
        float(jnp.max(jnp.abs(out - ref))))
    print("KERNEL_OK")
</pallas_src>

<mosaic_0001>
module attributes {stable_mosaic.version = 11 : i64} {
  func.func @mlp_kernel(%arg0: memref<8x256xf32, #tpu.memory_space<vmem>>, %arg1: memref<256x128xbf16, #tpu.memory_space<vmem>>, %arg2: memref<128x128xbf16, #tpu.memory_space<vmem>>, %arg3: memref<128x256xbf16, #tpu.memory_space<vmem>>, %arg4: memref<256x128xbf16, #tpu.memory_space<vmem>>, %arg5: memref<128x128xbf16, #tpu.memory_space<vmem>>, %arg6: memref<16x256xf32, #tpu.memory_space<vmem>>, %arg7: memref<8x128xf32, #tpu.memory_space<vmem>>) attributes {dimension_semantics = [], scalar_prefetch = 0 : i64, scratch_operands = 0 : i64, tpu.core_type = #tpu.core_type<tc>} {
    %c0 = arith.constant 0 : index
    %c0_0 = arith.constant 0 : index
    %0 = vector.load %arg0[%c0, %c0_0] : memref<8x256xf32, #tpu.memory_space<vmem>>, vector<8x256xf32>
    %1 = arith.truncf %0 : vector<8x256xf32> to vector<8x256xbf16>
    %c0_1 = arith.constant 0 : index
    %c0_2 = arith.constant 0 : index
    %2 = vector.load %arg1[%c0_1, %c0_2] : memref<256x128xbf16, #tpu.memory_space<vmem>>, vector<256x128xbf16>
    %cst = arith.constant dense<0.000000e+00> : vector<8x128xf32>
    %3 = tpu.matmul %1, %2, %cst {dimension_numbers = #tpu.dot_dimension_numbers<[1], [0], [0], [1], [0, 0, 1, 1], [], []>} : vector<8x256xbf16>, vector<256x128xbf16>, vector<8x128xf32> -> vector<8x128xf32>
    %c0_3 = arith.constant 0 : index
    %c0_4 = arith.constant 0 : index
    %4 = vector.load %arg6[%c0_3, %c0_4] : memref<16x256xf32, #tpu.memory_space<vmem>>, vector<1x128xf32>
    %c1 = arith.constant 1 : index
    %c0_5 = arith.constant 0 : index
    %5 = vector.load %arg6[%c1, %c0_5] : memref<16x256xf32, #tpu.memory_space<vmem>>, vector<1x128xf32>
    %cst_6 = arith.constant dense<0.000000e+00> : vector<128xf32>
    %6 = vector.multi_reduction <add>, %3, %cst_6 [0] : vector<8x128xf32> to vector<128xf32>
    %7 = vector.shape_cast %6 : vector<128xf32> to vector<1x128xf32>
    %cst_7 = arith.constant 1.250000e-01 : f32
    %8 = vector.broadcast %cst_7 : f32 to vector<1x128xf32>
    %9 = arith.mulf %7, %8 : vector<1x128xf32>
    %10 = arith.mulf %3, %3 : vector<8x128xf32>
    %cst_8 = arith.constant dense<0.000000e+00> : vector<128xf32>
    %11 = vector.multi_reduction <add>, %10, %cst_8 [0] : vector<8x128xf32> to vector<128xf32>
    %12 = vector.shape_cast %11 : vector<128xf32> to vector<1x128xf32>
    %cst_9 = arith.constant 1.250000e-01 : f32
    %13 = vector.broadcast %cst_9 : f32 to vector<1x128xf32>
    %14 = arith.mulf %12, %13 : vector<1x128xf32>
    %15 = arith.mulf %9, %9 : vector<1x128xf32>
    %16 = arith.subf %14, %15 : vector<1x128xf32>
    %cst_10 = arith.constant 9.99999974E-6 : f32
    %17 = vector.broadcast %cst_10 : f32 to vector<1x128xf32>
    %18 = arith.addf %16, %17 : vector<1x128xf32>
    %19 = math.rsqrt %18 : vector<1x128xf32>
    %20 = arith.mulf %4, %19 : vector<1x128xf32>
    %21 = arith.mulf %9, %20 : vector<1x128xf32>
    %22 = arith.subf %5, %21 : vector<1x128xf32>
    %23 = vector.broadcast %20 : vector<1x128xf32> to vector<8x128xf32>
    %24 = arith.mulf %3, %23 : vector<8x128xf32>
    %25 = vector.broadcast %22 : vector<1x128xf32> to vector<8x128xf32>
    %26 = arith.addf %24, %25 : vector<8x128xf32>
    %cst_11 = arith.constant 0.000000e+00 : f32
    %27 = vector.broadcast %cst_11 : f32 to vector<8x128xf32>
    %28 = arith.maximumf %26, %27 : vector<8x128xf32>
    %29 = arith.truncf %28 : vector<8x128xf32> to vector<8x128xbf16>
    %c0_12 = arith.constant 0 : index
    %c0_13 = arith.constant 0 : index
    %30 = vector.load %arg2[%c0_12, %c0_13] : memref<128x128xbf16, #tpu.memory_space<vmem>>, vector<128x128xbf16>
    %cst_14 = arith.constant dense<0.000000e+00> : vector<8x128xf32>
    %31 = tpu.matmul %29, %30, %cst_14 {dimension_numbers = #tpu.dot_dimension_numbers<[1], [0], [0], [1], [0, 0, 1, 1], [], []>} : vector<8x128xbf16>, vector<128x128xbf16>, vector<8x128xf32> -> vector<8x128xf32>
    %c2 = arith.constant 2 : index
    %c0_15 = arith.constant 0 : index
    %32 = vector.load %arg6[%c2, %c0_15] : memref<16x256xf32, #tpu.memory_space<vmem>>, vector<1x128xf32>
    %c3 = arith.constant 3 : index
    %c0_16 = arith.constant 0 : index
    %33 = vector.load %arg6[%c3, %c0_16] : memref<16x256xf32, #tpu.memory_space<vmem>>, vector<1x128xf32>
    %cst_17 = arith.constant dense<0.000000e+00> : vector<128xf32>
    %34 = vector.multi_reduction <add>, %31, %cst_17 [0] : vector<8x128xf32> to vector<128xf32>
    %35 = vector.shape_cast %34 : vector<128xf32> to vector<1x128xf32>
    %cst_18 = arith.constant 1.250000e-01 : f32
    %36 = vector.broadcast %cst_18 : f32 to vector<1x128xf32>
    %37 = arith.mulf %35, %36 : vector<1x128xf32>
    %38 = arith.mulf %31, %31 : vector<8x128xf32>
    %cst_19 = arith.constant dense<0.000000e+00> : vector<128xf32>
    %39 = vector.multi_reduction <add>, %38, %cst_19 [0] : vector<8x128xf32> to vector<128xf32>
    %40 = vector.shape_cast %39 : vector<128xf32> to vector<1x128xf32>
    %cst_20 = arith.constant 1.250000e-01 : f32
    %41 = vector.broadcast %cst_20 : f32 to vector<1x128xf32>
    %42 = arith.mulf %40, %41 : vector<1x128xf32>
    %43 = arith.mulf %37, %37 : vector<1x128xf32>
    %44 = arith.subf %42, %43 : vector<1x128xf32>
    %cst_21 = arith.constant 9.99999974E-6 : f32
    %45 = vector.broadcast %cst_21 : f32 to vector<1x128xf32>
    %46 = arith.addf %44, %45 : vector<1x128xf32>
    %47 = math.rsqrt %46 : vector<1x128xf32>
    %48 = arith.mulf %32, %47 : vector<1x128xf32>
    %49 = arith.mulf %37, %48 : vector<1x128xf32>
    %50 = arith.subf %33, %49 : vector<1x128xf32>
    %51 = vector.broadcast %48 : vector<1x128xf32> to vector<8x128xf32>
    %52 = arith.mulf %31, %51 : vector<8x128xf32>
    %53 = vector.broadcast %50 : vector<1x128xf32> to vector<8x128xf32>
    %54 = arith.addf %52, %53 : vector<8x128xf32>
    %cst_22 = arith.constant 0.000000e+00 : f32
    %55 = vector.broadcast %cst_22 : f32 to vector<8x128xf32>
    %56 = arith.maximumf %54, %55 : vector<8x128xf32>
    %57 = arith.truncf %56 : vector<8x128xf32> to vector<8x128xbf16>
    %c0_23 = arith.constant 0 : index
    %c0_24 = arith.constant 0 : index
    %58 = vector.load %arg3[%c0_23, %c0_24] : memref<128x256xbf16, #tpu.memory_space<vmem>>, vector<128x256xbf16>
    %cst_25 = arith.constant dense<0.000000e+00> : vector<8x256xf32>
    %59 = tpu.matmul %57, %58, %cst_25 {dimension_numbers = #tpu.dot_dimension_numbers<[1], [0], [0], [1], [0, 0, 1, 1], [], []>} : vector<8x128xbf16>, vector<128x256xbf16>, vector<8x256xf32> -> vector<8x256xf32>
    %c4 = arith.constant 4 : index
    %c0_26 = arith.constant 0 : index
    %60 = vector.load %arg6[%c4, %c0_26] : memref<16x256xf32, #tpu.memory_space<vmem>>, vector<1x256xf32>
    %c5 = arith.constant 5 : index
    %c0_27 = arith.constant 0 : index
    %61 = vector.load %arg6[%c5, %c0_27] : memref<16x256xf32, #tpu.memory_space<vmem>>, vector<1x256xf32>
    %cst_28 = arith.constant dense<0.000000e+00> : vector<256xf32>
    %62 = vector.multi_reduction <add>, %59, %cst_28 [0] : vector<8x256xf32> to vector<256xf32>
    %63 = vector.shape_cast %62 : vector<256xf32> to vector<1x256xf32>
    %cst_29 = arith.constant 1.250000e-01 : f32
    %64 = vector.broadcast %cst_29 : f32 to vector<1x256xf32>
    %65 = arith.mulf %63, %64 : vector<1x256xf32>
    %66 = arith.mulf %59, %59 : vector<8x256xf32>
    %cst_30 = arith.constant dense<0.000000e+00> : vector<256xf32>
    %67 = vector.multi_reduction <add>, %66, %cst_30 [0] : vector<8x256xf32> to vector<256xf32>
    %68 = vector.shape_cast %67 : vector<256xf32> to vector<1x256xf32>
    %cst_31 = arith.constant 1.250000e-01 : f32
    %69 = vector.broadcast %cst_31 : f32 to vector<1x256xf32>
    %70 = arith.mulf %68, %69 : vector<1x256xf32>
    %71 = arith.mulf %65, %65 : vector<1x256xf32>
    %72 = arith.subf %70, %71 : vector<1x256xf32>
    %cst_32 = arith.constant 9.99999974E-6 : f32
    %73 = vector.broadcast %cst_32 : f32 to vector<1x256xf32>
    %74 = arith.addf %72, %73 : vector<1x256xf32>
    %75 = math.rsqrt %74 : vector<1x256xf32>
    %76 = arith.mulf %60, %75 : vector<1x256xf32>
    %77 = arith.mulf %65, %76 : vector<1x256xf32>
    %78 = arith.subf %61, %77 : vector<1x256xf32>
    %79 = vector.broadcast %76 : vector<1x256xf32> to vector<8x256xf32>
    %80 = arith.mulf %59, %79 : vector<8x256xf32>
    %81 = vector.broadcast %78 : vector<1x256xf32> to vector<8x256xf32>
    %82 = arith.addf %80, %81 : vector<8x256xf32>
    %cst_33 = arith.constant 0.000000e+00 : f32
    %83 = vector.broadcast %cst_33 : f32 to vector<8x256xf32>
    %84 = arith.maximumf %82, %83 : vector<8x256xf32>
    %85 = arith.truncf %84 : vector<8x256xf32> to vector<8x256xbf16>
    %c0_34 = arith.constant 0 : index
    %c0_35 = arith.constant 0 : index
    %86 = vector.load %arg4[%c0_34, %c0_35] : memref<256x128xbf16, #tpu.memory_space<vmem>>, vector<256x128xbf16>
    %cst_36 = arith.constant dense<0.000000e+00> : vector<8x128xf32>
    %87 = tpu.matmul %85, %86, %cst_36 {dimension_numbers = #tpu.dot_dimension_numbers<[1], [0], [0], [1], [0, 0, 1, 1], [], []>} : vector<8x256xbf16>, vector<256x128xbf16>, vector<8x128xf32> -> vector<8x128xf32>
    %c6 = arith.constant 6 : index
    %c0_37 = arith.constant 0 : index
    %88 = vector.load %arg6[%c6, %c0_37] : memref<16x256xf32, #tpu.memory_space<vmem>>, vector<1x128xf32>
    %c7 = arith.constant 7 : index
    %c0_38 = arith.constant 0 : index
    %89 = vector.load %arg6[%c7, %c0_38] : memref<16x256xf32, #tpu.memory_space<vmem>>, vector<1x128xf32>
    %cst_39 = arith.constant dense<0.000000e+00> : vector<128xf32>
    %90 = vector.multi_reduction <add>, %87, %cst_39 [0] : vector<8x128xf32> to vector<128xf32>
    %91 = vector.shape_cast %90 : vector<128xf32> to vector<1x128xf32>
    %cst_40 = arith.constant 1.250000e-01 : f32
    %92 = vector.broadcast %cst_40 : f32 to vector<1x128xf32>
    %93 = arith.mulf %91, %92 : vector<1x128xf32>
    %94 = arith.mulf %87, %87 : vector<8x128xf32>
    %cst_41 = arith.constant dense<0.000000e+00> : vector<128xf32>
    %95 = vector.multi_reduction <add>, %94, %cst_41 [0] : vector<8x128xf32> to vector<128xf32>
    %96 = vector.shape_cast %95 : vector<128xf32> to vector<1x128xf32>
    %cst_42 = arith.constant 1.250000e-01 : f32
    %97 = vector.broadcast %cst_42 : f32 to vector<1x128xf32>
    %98 = arith.mulf %96, %97 : vector<1x128xf32>
    %99 = arith.mulf %93, %93 : vector<1x128xf32>
    %100 = arith.subf %98, %99 : vector<1x128xf32>
    %cst_43 = arith.constant 9.99999974E-6 : f32
    %101 = vector.broadcast %cst_43 : f32 to vector<1x128xf32>
    %102 = arith.addf %100, %101 : vector<1x128xf32>
    %103 = math.rsqrt %102 : vector<1x128xf32>
    %104 = arith.mulf %88, %103 : vector<1x128xf32>
    %105 = arith.mulf %93, %104 : vector<1x128xf32>
    %106 = arith.subf %89, %105 : vector<1x128xf32>
    %107 = vector.broadcast %104 : vector<1x128xf32> to vector<8x128xf32>
    %108 = arith.mulf %87, %107 : vector<8x128xf32>
    %109 = vector.broadcast %106 : vector<1x128xf32> to vector<8x128xf32>
    %110 = arith.addf %108, %109 : vector<8x128xf32>
    %cst_44 = arith.constant 0.000000e+00 : f32
    %111 = vector.broadcast %cst_44 : f32 to vector<8x128xf32>
    %112 = arith.maximumf %110, %111 : vector<8x128xf32>
    %113 = arith.truncf %112 : vector<8x128xf32> to vector<8x128xbf16>
    %c0_45 = arith.constant 0 : index
    %c0_46 = arith.constant 0 : index
    %114 = vector.load %arg5[%c0_45, %c0_46] : memref<128x128xbf16, #tpu.memory_space<vmem>>, vector<128x128xbf16>
    %cst_47 = arith.constant dense<0.000000e+00> : vector<8x128xf32>
    %115 = tpu.matmul %113, %114, %cst_47 {dimension_numbers = #tpu.dot_dimension_numbers<[1], [0], [0], [1], [0, 0, 1, 1], [], []>} : vector<8x128xbf16>, vector<128x128xbf16>, vector<8x128xf32> -> vector<8x128xf32>
    %c8 = arith.constant 8 : index
    %c0_48 = arith.constant 0 : index
    %116 = vector.load %arg6[%c8, %c0_48] : memref<16x256xf32, #tpu.memory_space<vmem>>, vector<1x128xf32>
    %117 = vector.broadcast %116 : vector<1x128xf32> to vector<8x128xf32>
    %118 = arith.addf %115, %117 : vector<8x128xf32>
    %c0_49 = arith.constant 0 : index
    %c0_50 = arith.constant 0 : index
    %119 = vector.load %arg7[%c0_49, %c0_50] : memref<8x128xf32, #tpu.memory_space<vmem>>, vector<8x128xf32>
    tpu.vector_store %arg7[%c0_49, %c0_50], %118 {strides = array<i32>} : memref<8x128xf32, #tpu.memory_space<vmem>>, vector<8x128xf32>,
    return
  }
}

</mosaic_0001>

<llo_original>
// kernel: model_clf_forward.1
$region0: #{model_clf_forward.1}
  #allocation0 [shape = 'u32[]', space=smem, size = 0x4, offset = 0x4, fixed_abs, tag = 'smem constant byte address 0x4 - core index']
  #allocation1 [shape = 'u32[144,128]{1,0:T(1,128)}', space=vmem, size = 0x12000, scoped, tag = 'internal scratch']
  %s0 = inlined_call_operand.vmem [shape: f32[8,256], index: 0, kind: input, shape index: {}]
  %s1 = inlined_call_operand.vmem [shape: bf16[256,128], index: 1, kind: input, shape index: {}]
  %s2 = inlined_call_operand.hbm [shape: bf16[128,128], index: 2, kind: input, shape index: {}]
  %s3 = inlined_call_operand.hbm [shape: bf16[128,256], index: 3, kind: input, shape index: {}]
  %s4 = inlined_call_operand.hbm [shape: bf16[256,128], index: 4, kind: input, shape index: {}]
  %s5 = inlined_call_operand.hbm [shape: bf16[128,128], index: 5, kind: input, shape index: {}]
  %s6 = inlined_call_operand.hbm [shape: f32[16,256], index: 6, kind: input, shape index: {}]
  %s7 = inlined_call_operand.hbm [shape: f32[8,128], index: 7, kind: output, shape index: {}]
  %s8 = sld [smem:[#allocation0]]
  $region58: #{model_clf_forward.1} parent=0
    _
  %s10 = ssub.s32 1, %s8
  %s11 = scalar_select 0, %s10, %s8
  $region1: #{model_clf_forward.1} parent=0
    #allocation2 [shape = 'u8[32768]{0}', space=vmem, size = 0x8000, scoped, tag = 'input window, operand 2, single buffered']
    #allocation3 [shape = 's32[1]{0}', space=sflag, size = 0x4, scoped, tag = 'scoped memory for model_clf_forward.1']
    #allocation4 [shape = 's32[1]{0}', space=sflag, size = 0x4, scoped, tag = 'scoped memory for model_clf_forward.1']
    #allocation5 [shape = 'u8[65536]{0}', space=vmem, size = 0x10000, scoped, tag = 'input window, operand 3, single buffered']
    #allocation6 [shape = 's32[1]{0}', space=sflag, size = 0x4, scoped, tag = 'scoped memory for model_clf_forward.1']
    #allocation7 [shape = 'u8[65536]{0}', space=vmem, size = 0x10000, scoped, tag = 'input window, operand 4, single buffered']
    #allocation8 [shape = 'u8[32768]{0}', space=vmem, size = 0x8000, scoped, tag = 'input window, operand 5, single buffered']
    #allocation9 [shape = 's32[1]{0}', space=sflag, size = 0x4, scoped, tag = 'scoped memory for model_clf_forward.1']
    #allocation10 [shape = 'u8[16384]{0}', space=vmem, size = 0x4000, scoped, tag = 'input window, operand 6, single buffered']
    #allocation11 [shape = 'u8[4096]{0}', space=vmem, size = 0x1000, scoped, tag = 'output window, operand 0, single buffered']
    %12 = vsyncpa [#allocation3], 0
    %13 = vsyncpa [#allocation6], 0
    %14 = vsyncpa [#allocation9], 0
    %15 = vsyncpa [#allocation4], 0
    // Predicated region
    $region2: #{model_clf_forward.1} parent=1 // pred_check
      _
    $region3: #{model_clf_forward.1} parent=1 // pred_check_branch
      %17 = sbr.rel (0) target = $region5
    $region4: #{model_clf_forward.1} parent=1 // pred_region
      _
    $region5: #{model_clf_forward.1} parent=1 // pred_fallthru
      _
    // Predicated region
    $region6: #{model_clf_forward.1} parent=1 // pred_check
      _
    $region7: #{model_clf_forward.1} parent=1 // pred_check_branch
      %19 = sbr.rel (0) target = $region9
    $region8: #{model_clf_forward.1} parent=1 // pred_region
      _
    $region9: #{model_clf_forward.1} parent=1 // pred_fallthru
      _
    // Predicated region
    $region10: #{model_clf_forward.1} parent=1 // pred_check
      _
    $region11: #{model_clf_forward.1} parent=1 // pred_check_branch
      %21 = sbr.rel (0) target = $region13
    $region12: #{model_clf_forward.1} parent=1 // pred_region
      %s23 = ssub.s32 1024, 1024
      %24 = vsyncadd [#allocation3], %s23
      %s25 = sshll.u32 [#allocation2], 4
      %s26 = int_to_ptr.vmem [resolvable:$true] %s25
      %31 = dma.hbm_to_vmem [thread:$0]  %s2, 1024, %s26, [#allocation3], 64, 64, 4
    $region13: #{model_clf_forward.1} parent=1 // pred_fallthru
      _
    // Predicated region
    $region14: #{model_clf_forward.1} parent=1 // pred_check
      _
    $region15: #{model_clf_forward.1} parent=1 // pred_check_branch
      %33 = sbr.rel (0) target = $region17
    $region16: #{model_clf_forward.1} parent=1 // pred_region
      %s35 = ssub.s32 2048, 2048
      %36 = vsyncadd [#allocation6], %s35
      %s37 = sshll.u32 [#allocation5], 4
      %s38 = int_to_ptr.vmem [resolvable:$true] %s37
      %43 = dma.hbm_to_vmem [thread:$0]  %s3, 2048, %s38, [#allocation6], 128, 128, 8
    $region17: #{model_clf_forward.1} parent=1 // pred_fallthru
      _
    // Predicated region
    $region18: #{model_clf_forward.1} parent=1 // pred_check
      _
    $region19: #{model_clf_forward.1} parent=1 // pred_check_branch
      %45 = sbr.rel (0) target = $region21
    $region20: #{model_clf_forward.1} parent=1 // pred_region
      %s47 = ssub.s32 2048, 2048
      %48 = vsyncadd [#allocation6], %s47
      %s49 = sshll.u32 [#allocation7], 4
      %s50 = int_to_ptr.vmem [resolvable:$true] %s49
      %55 = dma.hbm_to_vmem [thread:$0]  %s4, 2048, %s50, [#allocation6], 64, 64, 4
    $region21: #{model_clf_forward.1} parent=1 // pred_fallthru
      _
    // Predicated region
    $region22: #{model_clf_forward.1} parent=1 // pred_check
      _
    $region23: #{model_clf_forward.1} parent=1 // pred_check_branch
      %57 = sbr.rel (0) target = $region25
    $region24: #{model_clf_forward.1} parent=1 // pred_region
      %s59 = ssub.s32 1024, 1024
      %60 = vsyncadd [#allocation9], %s59
      %s61 = sshll.u32 [#allocation8], 4
      %s62 = int_to_ptr.vmem [resolvable:$true] %s61
      %67 = dma.hbm_to_vmem [thread:$0]  %s5, 1024, %s62, [#allocation9], 64, 64, 4
    $region25: #{model_clf_forward.1} parent=1 // pred_fallthru
      _
    // Predicated region
    $region26: #{model_clf_forward.1} parent=1 // pred_check
      _
    $region27: #{model_clf_forward.1} parent=1 // pred_check_branch
      %69 = sbr.rel (0) target = $region29
    $region28: #{model_clf_forward.1} parent=1 // pred_region
      %s71 = ssub.s32 512, 512
      %72 = vsyncadd [#allocation9], %s71
      %s73 = sshll.u32 [#allocation10], 4
      %s74 = int_to_ptr.vmem [resolvable:$true] %s73
      %79 = dma.hbm_to_vmem [thread:$0]  %s6, 512, %s74, [#allocation9], 256, 256, 16
    $region29: #{model_clf_forward.1} parent=1 // pred_fallthru
      _
    // Predicated region
    $region30: #{model_clf_forward.1} parent=1 // pred_check
      _
    $region31: #{model_clf_forward.1} parent=1 // pred_check_branch
      %81 = sbr.rel (0) target = $region33
    $region32: #{model_clf_forward.1} parent=1 // pred_region
      %82 = dma.done [#allocation3], 1024
    $region33: #{model_clf_forward.1} parent=1 // pred_fallthru
      _
    // Predicated region
    $region34: #{model_clf_forward.1} parent=1 // pred_check
      _
    $region35: #{model_clf_forward.1} parent=1 // pred_check_branch
      %84 = sbr.rel (0) target = $region37
    $region36: #{model_clf_forward.1} parent=1 // pred_region
      %85 = dma.done [#allocation6], 2048
    $region37: #{model_clf_forward.1} parent=1 // pred_fallthru
      _
    // Predicated region
    $region38: #{model_clf_forward.1} parent=1 // pred_check
      _
    $region39: #{model_clf_forward.1} parent=1 // pred_check_branch
      %87 = sbr.rel (0) target = $region41
    $region40: #{model_clf_forward.1} parent=1 // pred_region
      %88 = dma.done [#allocation6], 2048
    $region41: #{model_clf_forward.1} parent=1 // pred_fallthru
      _
    // Predicated region
    $region42: #{model_clf_forward.1} parent=1 // pred_check
      _
    $region43: #{model_clf_forward.1} parent=1 // pred_check_branch
      %90 = sbr.rel (0) target = $region45
    $region44: #{model_clf_forward.1} parent=1 // pred_region
      %91 = dma.done [#allocation9], 1024
    $region45: #{model_clf_forward.1} parent=1 // pred_fallthru
      _
    // Predicated region
    $region46: #{model_clf_forward.1} parent=1 // pred_check
      _
    $region47: #{model_clf_forward.1} parent=1 // pred_check_branch
      %93 = sbr.rel (0) target = $region49
    $region48: #{model_clf_forward.1} parent=1 // pred_region
      %94 = dma.done [#allocation9], 512
    $region49: #{model_clf_forward.1} parent=1 // pred_fallthru
      _
    %v96 = vld [vmem:[%s0] sm:$0xff]
    %v97 = vld [vmem:[%s0 + $0x8] sm:$0xff]
    %v98 = vpack.c.bf16 %v96, %v96
    %v99 = vpack.c.bf16 %v97, %v97
    %v100 = vld [vmem:[%s1] sm:$0xf]
    %v101 = vld [vmem:[%s1 + $0x4] sm:$0xf]
    %v102 = vld [vmem:[%s1 + $0x8] sm:$0xf]
    %v103 = vld [vmem:[%s1 + $0xc] sm:$0xf]
    %v104 = vld [vmem:[%s1 + $0x10] sm:$0xf]
    %v105 = vld [vmem:[%s1 + $0x14] sm:$0xf]
    %v106 = vld [vmem:[%s1 + $0x18] sm:$0xf]
    %v107 = vld [vmem:[%s1 + $0x1c] sm:$0xf]
    %v108 = vld [vmem:[%s1 + $0x20] sm:$0xf]
    %v109 = vld [vmem:[%s1 + $0x24] sm:$0xf]
    %v110 = vld [vmem:[%s1 + $0x28] sm:$0xf]
    %v111 = vld [vmem:[%s1 + $0x2c] sm:$0xf]
    %v112 = vld [vmem:[%s1 + $0x30] sm:$0xf]
    %v113 = vld [vmem:[%s1 + $0x34] sm:$0xf]
    %v114 = vld [vmem:[%s1 + $0x38] sm:$0xf]
    %v115 = vld [vmem:[%s1 + $0x3c] sm:$0xf]
    %v116 = vld [vmem:[%s1 + $0x40] sm:$0xf]
    %v117 = vld [vmem:[%s1 + $0x44] sm:$0xf]
    %v118 = vld [vmem:[%s1 + $0x48] sm:$0xf]
    %v119 = vld [vmem:[%s1 + $0x4c] sm:$0xf]
    %v120 = vld [vmem:[%s1 + $0x50] sm:$0xf]
    %v121 = vld [vmem:[%s1 + $0x54] sm:$0xf]
    %v122 = vld [vmem:[%s1 + $0x58] sm:$0xf]
    %v123 = vld [vmem:[%s1 + $0x5c] sm:$0xf]
    %v124 = vld [vmem:[%s1 + $0x60] sm:$0xf]
    %v125 = vld [vmem:[%s1 + $0x64] sm:$0xf]
    %v126 = vld [vmem:[%s1 + $0x68] sm:$0xf]
    %v127 = vld [vmem:[%s1 + $0x6c] sm:$0xf]
    %v128 = vld [vmem:[%s1 + $0x70] sm:$0xf]
    %v129 = vld [vmem:[%s1 + $0x74] sm:$0xf]
    %v130 = vld [vmem:[%s1 + $0x78] sm:$0xf]
    %v131 = vld [vmem:[%s1 + $0x7c] sm:$0xf]
    %v164 = vunpack.c.l.b16 %v100
    %v165 = vunpack.c.l.b16 %v101
    %v166 = vunpack.c.l.b16 %v102
    %v167 = vunpack.c.l.b16 %v103
    %v168 = vunpack.c.l.b16 %v104
    %v169 = vunpack.c.l.b16 %v105
    %v170 = vunpack.c.l.b16 %v106
    %v171 = vunpack.c.l.b16 %v107
    %v172 = vunpack.c.l.b16 %v108
    %v173 = vunpack.c.l.b16 %v109
    %v174 = vunpack.c.l.b16 %v110
    %v175 = vunpack.c.l.b16 %v111
    %v176 = vunpack.c.l.b16 %v112
    %v177 = vunpack.c.l.b16 %v113
    %v178 = vunpack.c.l.b16 %v114
    %v179 = vunpack.c.l.b16 %v115
    %v180 = vunpack.c.l.b16 %v116
    %v181 = vunpack.c.l.b16 %v117
    %v182 = vunpack.c.l.b16 %v118
    %v183 = vunpack.c.l.b16 %v119
    %v184 = vunpack.c.l.b16 %v120
    %v185 = vunpack.c.l.b16 %v121
    %v186 = vunpack.c.l.b16 %v122
    %v187 = vunpack.c.l.b16 %v123
    %v188 = vunpack.c.l.b16 %v124
    %v189 = vunpack.c.l.b16 %v125
    %v190 = vunpack.c.l.b16 %v126
    %v191 = vunpack.c.l.b16 %v127
    %v192 = vunpack.c.l.b16 %v128
    %v193 = vunpack.c.l.b16 %v129
    %v194 = vunpack.c.l.b16 %v130
    %v195 = vunpack.c.l.b16 %v131
    %v196 = vpack.c.b16 %v165, %v164
    %v197 = vpack.c.b16 %v167, %v166
    %v198 = vpack.c.b16 %v169, %v168
    %v199 = vpack.c.b16 %v171, %v170
    %v200 = vpack.c.b16 %v173, %v172
    %v201 = vpack.c.b16 %v175, %v174
    %v202 = vpack.c.b16 %v177, %v176
    %v203 = vpack.c.b16 %v179, %v178
    %v204 = vpack.c.b16 %v181, %v180
    %v205 = vpack.c.b16 %v183, %v182
    %v206 = vpack.c.b16 %v185, %v184
    %v207 = vpack.c.b16 %v187, %v186
    %v208 = vpack.c.b16 %v189, %v188
    %v209 = vpack.c.b16 %v191, %v190
    %v210 = vpack.c.b16 %v193, %v192
    %v211 = vpack.c.b16 %v195, %v194
    %228 = vmatprep.subr.bf16.mxu0 0
    %229 = vmatpush1.bf16.msra.mxu0 %v196
    %230 = vmatprep.subr.bf16.mxu0 0
    %231 = vmatpush1.bf16.msra.mxu0 %v197
    %232 = vmatprep.subr.bf16.mxu0 0
    %233 = vmatpush1.bf16.msra.mxu0 %v198
    %234 = vmatprep.subr.bf16.mxu0 0
    %235 = vmatpush1.bf16.msra.mxu0 %v199
    %236 = vmatprep.subr.bf16.mxu0 0
    %237 = vmatpush1.bf16.msra.mxu0 %v200
    %238 = vmatprep.subr.bf16.mxu0 0
    %239 = vmatpush1.bf16.msra.mxu0 %v201
    %240 = vmatprep.subr.bf16.mxu0 0
    %241 = vmatpush1.bf16.msra.mxu0 %v202
    %242 = vmatprep.subr.bf16.mxu0 0
    %243 = vmatpush1.bf16.msra.mxu0 %v203
    %244 = vmatprep.subr.bf16.mxu0 0
    %245 = vmatpush1.bf16.msra.mxu0 %v204
    %246 = vmatprep.subr.bf16.mxu0 0
    %247 = vmatpush1.bf16.msra.mxu0 %v205
    %248 = vmatprep.subr.bf16.mxu0 0
    %249 = vmatpush1.bf16.msra.mxu0 %v206
    %250 = vmatprep.subr.bf16.mxu0 0
    %251 = vmatpush1.bf16.msra.mxu0 %v207
    %252 = vmatprep.subr.bf16.mxu0 0
    %253 = vmatpush1.bf16.msra.mxu0 %v208
    %254 = vmatprep.subr.bf16.mxu0 0
    %255 = vmatpush1.bf16.msra.mxu0 %v209
    %256 = vmatprep.subr.bf16.mxu0 0
    %257 = vmatpush1.bf16.msra.mxu0 %v210
    %258 = vmatprep.subr.bf16.mxu0 0
    %259 = vmatpush1.bf16.msra.mxu0 %v211
    %260 = vmatprep.mubr.bf16.mxu0 %v99
    %261 = vmatmul.mubr.bf16.gmra.mrb[0].mxu0 %v98
    %v262 = vpop.f32.mrb[0].mxu0
    %v263 = vadd.f32 0.0, %v262
    %v264 = vpop.f32.mrb[0].mxu0
    %v265 = vpop.f32.mrb[0].mxu0
    %v266 = vpop.f32.mrb[0].mxu0
    %267 = vdwg.mxu0
    %v268 = vld [vmem:[#allocation10] ss:$0 sm:$0xff]
    %v269 = vld [vmem:[#allocation10 + $0x1] ss:$0 sm:$0xff]
    %v270 = vrot.slane %v263, 4
    %v271 = vadd.f32 %v263, %v270
    %v272 = vrot.slane %v271, 2
    %v273 = vadd.f32 %v271, %v272
    %v274 = vrot.slane %v273, 1
    %v275 = vadd.f32 %v273, %v274
    %v276 = vmul.f32 %v275, 0.125
    %v277 = vmul.f32 %v263, %v263
    %v278 = vrot.slane %v277, 4
    %v279 = vadd.f32 %v277, %v278
    %v280 = vrot.slane %v279, 2
    %v281 = vadd.f32 %v279, %v280
    %v282 = vrot.slane %v281, 1
    %v283 = vadd.f32 %v281, %v282
    %v284 = vmul.f32 %v283, 0.125
    %v285 = vmul.f32 %v276, %v276
    %v286 = vsub.f32 %v284, %v285
    %v287 = vadd.f32 %v286, 1e-05
    %v288 = vrsqrt.pop %v287
    %v289 = vmul.f32 %v268, %v288
    %v290 = vmul.f32 %v276, %v289
    %v291 = vsub.f32 %v269, %v290
    %v292 = vmul.f32 %v263, %v289
    %v293 = vadd.f32 %v292, %v291
    %v294 = vmax.f32 %v293, 0.0
    %v295 = vpack.c.bf16 %v294, %v294
    %v296 = vld [vmem:[#allocation2] sm:$0xf]
    %v297 = vld [vmem:[#allocation2 + $0x4] sm:$0xf]
    %v298 = vld [vmem:[#allocation2 + $0x8] sm:$0xf]
    %v299 = vld [vmem:[#allocation2 + $0xc] sm:$0xf]
    %v300 = vld [vmem:[#allocation2 + $0x10] sm:$0xf]
    %v301 = vld [vmem:[#allocation2 + $0x14] sm:$0xf]
    %v302 = vld [vmem:[#allocation2 + $0x18] sm:$0xf]
    %v303 = vld [vmem:[#allocation2 + $0x1c] sm:$0xf]
    %v304 = vld [vmem:[#allocation2 + $0x20] sm:$0xf]
    %v305 = vld [vmem:[#allocation2 + $0x24] sm:$0xf]
    %v306 = vld [vmem:[#allocation2 + $0x28] sm:$0xf]
    %v307 = vld [vmem:[#allocation2 + $0x2c] sm:$0xf]
    %v308 = vld [vmem:[#allocation2 + $0x30] sm:$0xf]
    %v309 = vld [vmem:[#allocation2 + $0x34] sm:$0xf]
    %v310 = vld [vmem:[#allocation2 + $0x38] sm:$0xf]
    %v311 = vld [vmem:[#allocation2 + $0x3c] sm:$0xf]
    %v328 = vunpack.c.l.b16 %v296
    %v329 = vunpack.c.l.b16 %v297
    %v330 = vunpack.c.l.b16 %v298
    %v331 = vunpack.c.l.b16 %v299
    %v332 = vunpack.c.l.b16 %v300
    %v333 = vunpack.c.l.b16 %v301
    %v334 = vunpack.c.l.b16 %v302
    %v335 = vunpack.c.l.b16 %v303
    %v336 = vunpack.c.l.b16 %v304
    %v337 = vunpack.c.l.b16 %v305
    %v338 = vunpack.c.l.b16 %v306
    %v339 = vunpack.c.l.b16 %v307
    %v340 = vunpack.c.l.b16 %v308
    %v341 = vunpack.c.l.b16 %v309
    %v342 = vunpack.c.l.b16 %v310
    %v343 = vunpack.c.l.b16 %v311
    %v344 = vpack.c.b16 %v329, %v328
    %v345 = vpack.c.b16 %v331, %v330
    %v346 = vpack.c.b16 %v333, %v332
    %v347 = vpack.c.b16 %v335, %v334
    %v348 = vpack.c.b16 %v337, %v336
    %v349 = vpack.c.b16 %v339, %v338
    %v350 = vpack.c.b16 %v341, %v340
    %v351 = vpack.c.b16 %v343, %v342
    %360 = vmatprep.subr.bf16.mxu0 0
    %361 = vmatpush1.bf16.msra.mxu0 %v344
    %362 = vmatprep.subr.bf16.mxu0 0
    %363 = vmatpush1.bf16.msra.mxu0 %v345
    %364 = vmatprep.subr.bf16.mxu0 0
    %365 = vmatpush1.bf16.msra.mxu0 %v346
    %366 = vmatprep.subr.bf16.mxu0 0
    %367 = vmatpush1.bf16.msra.mxu0 %v347
    %368 = vmatprep.subr.bf16.mxu0 0
    %369 = vmatpush1.bf16.msra.mxu0 %v348
    %370 = vmatprep.subr.bf16.mxu0 0
    %371 = vmatpush1.bf16.msra.mxu0 %v349
    %372 = vmatprep.subr.bf16.mxu0 0
    %373 = vmatpush1.bf16.msra.mxu0 %v350
    %374 = vmatprep.subr.bf16.mxu0 0
    %375 = vmatpush1.bf16.msra.mxu0 %v351
    %376 = vmatprep.subr.bf16.mxu0 0
    %377 = vmatpush1.bf16.msra.mxu0 0
    %378 = vmatprep.subr.bf16.mxu0 0
    %379 = vmatpush1.bf16.msra.mxu0 0
    %380 = vmatprep.subr.bf16.mxu0 0
    %381 = vmatpush1.bf16.msra.mxu0 0
    %382 = vmatprep.subr.bf16.mxu0 0
    %383 = vmatpush1.bf16.msra.mxu0 0
    %384 = vmatprep.subr.bf16.mxu0 0
    %385 = vmatpush1.bf16.msra.mxu0 0
    %386 = vmatprep.subr.bf16.mxu0 0
    %387 = vmatpush1.bf16.msra.mxu0 0
    %388 = vmatprep.subr.bf16.mxu0 0
    %389 = vmatpush1.bf16.msra.mxu0 0
    %390 = vmatprep.subr.bf16.mxu0 0
    %391 = vmatpush1.bf16.msra.mxu0 0
    %392 = vmatprep.mubr.bf16.mxu0 0
    %393 = vmatmul.mubr.bf16.gmra.mrb[0].mxu0 %v295
    %v394 = vpop.f32.mrb[0].mxu0
    %v395 = vadd.f32 0.0, %v394
    %v396 = vpop.f32.mrb[0].mxu0
    %v397 = vpop.f32.mrb[0].mxu0
    %v398 = vpop.f32.mrb[0].mxu0
    %399 = vdwg.mxu0
    %v400 = vld [vmem:[#allocation10 + $0x2] ss:$0 sm:$0xff]
    %v401 = vld [vmem:[#allocation10 + $0x3] ss:$0 sm:$0xff]
    %v402 = vrot.slane %v395, 4
    %v403 = vadd.f32 %v395, %v402
    %v404 = vrot.slane %v403, 2
    %v405 = vadd.f32 %v403, %v404
    %v406 = vrot.slane %v405, 1
    %v407 = vadd.f32 %v405, %v406
    %v408 = vmul.f32 %v407, 0.125
    %v409 = vmul.f32 %v395, %v395
    %v410 = vrot.slane %v409, 4
    %v411 = vadd.f32 %v409, %v410
    %v412 = vrot.slane %v411, 2
    %v413 = vadd.f32 %v411, %v412
    %v414 = vrot.slane %v413, 1
    %v415 = vadd.f32 %v413, %v414
    %v416 = vmul.f32 %v415, 0.125
    %v417 = vmul.f32 %v408, %v408
    %v418 = vsub.f32 %v416, %v417
    %v419 = vadd.f32 %v418, 1e-05
    %v420 = vrsqrt.pop %v419
    %v421 = vmul.f32 %v400, %v420
    %v422 = vmul.f32 %v408, %v421
    %v423 = vsub.f32 %v401, %v422
    %v424 = vmul.f32 %v395, %v421
    %v425 = vadd.f32 %v424, %v423
    %v426 = vmax.f32 %v425, 0.0
    %v427 = vpack.c.bf16 %v426, %v426
    %v428 = vld [vmem:[#allocation5] sm:$0xff]
    %v429 = vld [vmem:[#allocation5 + $0x8] sm:$0xff]
    %v430 = vld [vmem:[#allocation5 + $0x10] sm:$0xff]
    %v431 = vld [vmem:[#allocation5 + $0x18] sm:$0xff]
    %v432 = vld [vmem:[#allocation5 + $0x20] sm:$0xff]
    %v433 = vld [vmem:[#allocation5 + $0x28] sm:$0xff]
    %v434 = vld [vmem:[#allocation5 + $0x30] sm:$0xff]
    %v435 = vld [vmem:[#allocation5 + $0x38] sm:$0xff]
    %v436 = vld [vmem:[#allocation5 + $0x40] sm:$0xff]
    %v437 = vld [vmem:[#allocation5 + $0x48] sm:$0xff]
    %v438 = vld [vmem:[#allocation5 + $0x50] sm:$0xff]
    %v439 = vld [vmem:[#allocation5 + $0x58] sm:$0xff]
    %v440 = vld [vmem:[#allocation5 + $0x60] sm:$0xff]
    %v441 = vld [vmem:[#allocation5 + $0x68] sm:$0xff]
    %v442 = vld [vmem:[#allocation5 + $0x70] sm:$0xff]
    %v443 = vld [vmem:[#allocation5 + $0x78] sm:$0xff]
    %v460 = vunpack.c.l.b16 %v428
    %v461 = vunpack.c.h.b16 %v428
    %v462 = vunpack.c.l.b16 %v429
    %v463 = vunpack.c.h.b16 %v429
    %v464 = vunpack.c.l.b16 %v430
    %v465 = vunpack.c.h.b16 %v430
    %v466 = vunpack.c.l.b16 %v431
    %v467 = vunpack.c.h.b16 %v431
    %v468 = vunpack.c.l.b16 %v432
    %v469 = vunpack.c.h.b16 %v432
    %v470 = vunpack.c.l.b16 %v433
    %v471 = vunpack.c.h.b16 %v433
    %v472 = vunpack.c.l.b16 %v434
    %v473 = vunpack.c.h.b16 %v434
    %v474 = vunpack.c.l.b16 %v435
    %v475 = vunpack.c.h.b16 %v435
    %v476 = vunpack.c.l.b16 %v436
    %v477 = vunpack.c.h.b16 %v436
    %v478 = vunpack.c.l.b16 %v437
    %v479 = vunpack.c.h.b16 %v437
    %v480 = vunpack.c.l.b16 %v438
    %v481 = vunpack.c.h.b16 %v438
    %v482 = vunpack.c.l.b16 %v439
    %v483 = vunpack.c.h.b16 %v439
    %v484 = vunpack.c.l.b16 %v440
    %v485 = vunpack.c.h.b16 %v440
    %v486 = vunpack.c.l.b16 %v441
    %v487 = vunpack.c.h.b16 %v441
    %v488 = vunpack.c.l.b16 %v442
    %v489 = vunpack.c.h.b16 %v442
    %v490 = vunpack.c.l.b16 %v443
    %v491 = vunpack.c.h.b16 %v443
    %v492 = vpack.c.b16 %v462, %v460
    %v493 = vpack.c.b16 %v463, %v461
    %v494 = vpack.c.b16 %v466, %v464
    %v495 = vpack.c.b16 %v467, %v465
    %v496 = vpack.c.b16 %v470, %v468
    %v497 = vpack.c.b16 %v471, %v469
    %v498 = vpack.c.b16 %v474, %v472
    %v499 = vpack.c.b16 %v475, %v473
    %v500 = vpack.c.b16 %v478, %v476
    %v501 = vpack.c.b16 %v479, %v477
    %v502 = vpack.c.b16 %v482, %v480
    %v503 = vpack.c.b16 %v483, %v481
    %v504 = vpack.c.b16 %v486, %v484
    %v505 = vpack.c.b16 %v487, %v485
    %v506 = vpack.c.b16 %v490, %v488
    %v507 = vpack.c.b16 %v491, %v489
    %524 = vmatprep.subr.bf16.mxu0 %v493
    %525 = vmatpush1.bf16.msra.mxu0 %v492
    %526 = vmatprep.subr.bf16.mxu0 %v495
    %527 = vmatpush1.bf16.msra.mxu0 %v494
    %528 = vmatprep.subr.bf16.mxu0 %v497
    %529 = vmatpush1.bf16.msra.mxu0 %v496
    %530 = vmatprep.subr.bf16.mxu0 %v499
    %531 = vmatpush1.bf16.msra.mxu0 %v498
    %532 = vmatprep.subr.bf16.mxu0 %v501
    %533 = vmatpush1.bf16.msra.mxu0 %v500
    %534 = vmatprep.subr.bf16.mxu0 %v503
    %535 = vmatpush1.bf16.msra.mxu0 %v502
    %536 = vmatprep.subr.bf16.mxu0 %v505
    %537 = vmatpush1.bf16.msra.mxu0 %v504
    %538 = vmatprep.subr.bf16.mxu0 %v507
    %539 = vmatpush1.bf16.msra.mxu0 %v506
    %540 = vmatprep.subr.bf16.mxu0 0
    %541 = vmatpush1.bf16.msra.mxu0 0
    %542 = vmatprep.subr.bf16.mxu0 0
    %543 = vmatpush1.bf16.msra.mxu0 0
    %544 = vmatprep.subr.bf16.mxu0 0
    %545 = vmatpush1.bf16.msra.mxu0 0
    %546 = vmatprep.subr.bf16.mxu0 0
    %547 = vmatpush1.bf16.msra.mxu0 0
    %548 = vmatprep.subr.bf16.mxu0 0
    %549 = vmatpush1.bf16.msra.mxu0 0
    %550 = vmatprep.subr.bf16.mxu0 0
    %551 = vmatpush1.bf16.msra.mxu0 0
    %552 = vmatprep.subr.bf16.mxu0 0
    %553 = vmatpush1.bf16.msra.mxu0 0
    %554 = vmatprep.subr.bf16.mxu0 0
    %555 = vmatpush1.bf16.msra.mxu0 0
    %556 = vmatprep.mubr.bf16.mxu0 0
    %557 = vmatmul.mubr.bf16.gmra.mrb[0].mxu0 %v427
    %v558 = vpop.f32.mrb[0].mxu0
    %v559 = vadd.f32 0.0, %v558
    %v560 = vpop.f32.mrb[0].mxu0
    %v561 = vadd.f32 0.0, %v560
    %v562 = vpop.f32.mrb[0].mxu0
    %v563 = vpop.f32.mrb[0].mxu0
    %564 = vdwg.mxu0
    %s565 = scalar_lea.vmem [#allocation10], 4
    %v566 = vld [vmem:[%s565] ss:$8 sm:$0x3]
    %s567 = scalar_lea.vmem [#allocation10], 5
    %v568 = vld [vmem:[%s567] ss:$8 sm:$0x3]
    %v569 = vrot.slane %v559, 4
    %v570 = vadd.f32 %v559, %v569
    %v571 = vrot.slane %v570, 2
    %v572 = vadd.f32 %v570, %v571
    %v573 = vrot.slane %v572, 1
    %v574 = vadd.f32 %v572, %v573
    %v575 = vrot.slane %v561, 4
    %v576 = vadd.f32 %v561, %v575
    %v577 = vrot.slane %v576, 2
    %v578 = vadd.f32 %v576, %v577
    %v579 = vrot.slane %v578, 1
    %v580 = vadd.f32 %v578, %v579
    %v581 = vmul.f32 %v574, 0.125
    %v582 = vmul.f32 %v580, 0.125
    %v583 = vmul.f32 %v559, %v559
    %v584 = vmul.f32 %v561, %v561
    %v585 = vrot.slane %v583, 4
    %v586 = vadd.f32 %v583, %v585
    %v587 = vrot.slane %v586, 2
    %v588 = vadd.f32 %v586, %v587
    %v589 = vrot.slane %v588, 1
    %v590 = vadd.f32 %v588, %v589
    %v591 = vrot.slane %v584, 4
    %v592 = vadd.f32 %v584, %v591
    %v593 = vrot.slane %v592, 2
    %v594 = vadd.f32 %v592, %v593
    %v595 = vrot.slane %v594, 1
    %v596 = vadd.f32 %v594, %v595
    %v597 = vmul.f32 %v590, 0.125
    %v598 = vmul.f32 %v596, 0.125
    %v599 = vmul.f32 %v581, %v581
    %v600 = vmul.f32 %v582, %v582
    %v601 = vsub.f32 %v597, %v599
    %v602 = vsub.f32 %v598, %v600
    %v603 = vadd.f32 %v601, 1e-05
    %v604 = vadd.f32 %v602, 1e-05
    %v605 = vrsqrt.pop %v603
    %v606 = vrsqrt.pop %v604
    %v609 = vcombine.low %v605, %v606
    %v611 = vunpack.c.l.s4 1966171168
    %v612 = vunpack.c.0.s8 %v611
    %v613 = vlaneseq
    %v614 = vshrl.u32 %v613, 7
    %v615 = vsub.s32 %v612, %v614
    %v616 = vrot.slane %v609, %v615
    %v618 = vunpack.c.l.s4 1966171168
    %v619 = vunpack.c.0.s8 %v618
    %v620 = vlaneseq
    %v621 = vshrl.u32 %v620, 7
    %v622 = vsub.s32 %v619, %v621
    %v623 = vrot.slane %v616, %v622
    %v625 = vmul.f32 %v566, %v623
    %v627 = vlaneseq
    %v628 = vshrl.u32 %v627, 7
    %v629 = vsub.s32 0, %v628
    %v630 = vrot.slane %v625, %v629
    %v631 = vlaneseq
    %v632 = vshrl.u32 %v631, 7
    %v633 = vsub.s32 1, %v632
    %v634 = vrot.slane %v625, %v633
    %v637 = vmul.f32 %v581, %v630
    %v638 = vmul.f32 %v582, %v634
    %v641 = vcombine.low %v637, %v638
    %v643 = vunpack.c.l.s4 1966171168
    %v644 = vunpack.c.0.s8 %v643
    %v645 = vlaneseq
    %v646 = vshrl.u32 %v645, 7
    %v647 = vsub.s32 %v644, %v646
    %v648 = vrot.slane %v641, %v647
    %v650 = vunpack.c.l.s4 1966171168
    %v651 = vunpack.c.0.s8 %v650
    %v652 = vlaneseq
    %v653 = vshrl.u32 %v652, 7
    %v654 = vsub.s32 %v651, %v653
    %v655 = vrot.slane %v648, %v654
    %v657 = vsub.f32 %v568, %v655
    %v658 = vmul.f32 %v559, %v630
    %v659 = vmul.f32 %v561, %v634
    %v661 = vlaneseq
    %v662 = vshrl.u32 %v661, 7
    %v663 = vsub.s32 0, %v662
    %v664 = vrot.slane %v657, %v663
    %v665 = vlaneseq
    %v666 = vshrl.u32 %v665, 7
    %v667 = vsub.s32 1, %v666
    %v668 = vrot.slane %v657, %v667
    %v671 = vadd.f32 %v658, %v664
    %v672 = vadd.f32 %v659, %v668
    %v673 = vmax.f32 %v671, 0.0
    %v674 = vmax.f32 %v672, 0.0
    %v675 = vpack.c.bf16 %v673, %v673
    %v676 = vpack.c.bf16 %v674, %v674
    %v677 = vld [vmem:[#allocation7] sm:$0xf]
    %v678 = vld [vmem:[#allocation7 + $0x4] sm:$0xf]
    %v679 = vld [vmem:[#allocation7 + $0x8] sm:$0xf]
    %v680 = vld [vmem:[#allocation7 + $0xc] sm:$0xf]
    %v681 = vld [vmem:[#allocation7 + $0x10] sm:$0xf]
    %v682 = vld [vmem:[#allocation7 + $0x14] sm:$0xf]
    %v683 = vld [vmem:[#allocation7 + $0x18] sm:$0xf]
    %v684 = vld [vmem:[#allocation7 + $0x1c] sm:$0xf]
    %v685 = vld [vmem:[#allocation7 + $0x20] sm:$0xf]
    %v686 = vld [vmem:[#allocation7 + $0x24] sm:$0xf]
    %v687 = vld [vmem:[#allocation7 + $0x28] sm:$0xf]
    %v688 = vld [vmem:[#allocation7 + $0x2c] sm:$0xf]
    %v689 = vld [vmem:[#allocation7 + $0x30] sm:$0xf]
    %v690 = vld [vmem:[#allocation7 + $0x34] sm:$0xf]
    %v691 = vld [vmem:[#allocation7 + $0x38] sm:$0xf]
    %v692 = vld [vmem:[#allocation7 + $0x3c] sm:$0xf]
    %v693 = vld [vmem:[#allocation7 + $0x40] sm:$0xf]
    %v694 = vld [vmem:[#allocation7 + $0x44] sm:$0xf]
    %v695 = vld [vmem:[#allocation7 + $0x48] sm:$0xf]
    %v696 = vld [vmem:[#allocation7 + $0x4c] sm:$0xf]
    %v697 = vld [vmem:[#allocation7 + $0x50] sm:$0xf]
    %v698 = vld [vmem:[#allocation7 + $0x54] sm:$0xf]
    %v699 = vld [vmem:[#allocation7 + $0x58] sm:$0xf]
    %v700 = vld [vmem:[#allocation7 + $0x5c] sm:$0xf]
    %v701 = vld [vmem:[#allocation7 + $0x60] sm:$0xf]
    %v702 = vld [vmem:[#allocation7 + $0x64] sm:$0xf]
    %v703 = vld [vmem:[#allocation7 + $0x68] sm:$0xf]
    %v704 = vld [vmem:[#allocation7 + $0x6c] sm:$0xf]
    %v705 = vld [vmem:[#allocation7 + $0x70] sm:$0xf]
    %v706 = vld [vmem:[#allocation7 + $0x74] sm:$0xf]
    %v707 = vld [vmem:[#allocation7 + $0x78] sm:$0xf]
    %v708 = vld [vmem:[#allocation7 + $0x7c] sm:$0xf]
    %v741 = vunpack.c.l.b16 %v677
    %v742 = vunpack.c.l.b16 %v678
    %v743 = vunpack.c.l.b16 %v679
    %v744 = vunpack.c.l.b16 %v680
    %v745 = vunpack.c.l.b16 %v681
    %v746 = vunpack.c.l.b16 %v682
    %v747 = vunpack.c.l.b16 %v683
    %v748 = vunpack.c.l.b16 %v684
    %v749 = vunpack.c.l.b16 %v685
    %v750 = vunpack.c.l.b16 %v686
    %v751 = vunpack.c.l.b16 %v687
    %v752 = vunpack.c.l.b16 %v688
    %v753 = vunpack.c.l.b16 %v689
    %v754 = vunpack.c.l.b16 %v690
    %v755 = vunpack.c.l.b16 %v691
    %v756 = vunpack.c.l.b16 %v692
    %v757 = vunpack.c.l.b16 %v693
    %v758 = vunpack.c.l.b16 %v694
    %v759 = vunpack.c.l.b16 %v695
    %v760 = vunpack.c.l.b16 %v696
    %v761 = vunpack.c.l.b16 %v697
    %v762 = vunpack.c.l.b16 %v698
    %v763 = vunpack.c.l.b16 %v699
    %v764 = vunpack.c.l.b16 %v700
    %v765 = vunpack.c.l.b16 %v701
    %v766 = vunpack.c.l.b16 %v702
    %v767 = vunpack.c.l.b16 %v703
    %v768 = vunpack.c.l.b16 %v704
    %v769 = vunpack.c.l.b16 %v705
    %v770 = vunpack.c.l.b16 %v706
    %v771 = vunpack.c.l.b16 %v707
    %v772 = vunpack.c.l.b16 %v708
    %v773 = vpack.c.b16 %v742, %v741
    %v774 = vpack.c.b16 %v744, %v743
    %v775 = vpack.c.b16 %v746, %v745
    %v776 = vpack.c.b16 %v748, %v747
    %v777 = vpack.c.b16 %v750, %v749
    %v778 = vpack.c.b16 %v752, %v751
    %v779 = vpack.c.b16 %v754, %v753
    %v780 = vpack.c.b16 %v756, %v755
    %v781 = vpack.c.b16 %v758, %v757
    %v782 = vpack.c.b16 %v760, %v759
    %v783 = vpack.c.b16 %v762, %v761
    %v784 = vpack.c.b16 %v764, %v763
    %v785 = vpack.c.b16 %v766, %v765
    %v786 = vpack.c.b16 %v768, %v767
    %v787 = vpack.c.b16 %v770, %v769
    %v788 = vpack.c.b16 %v772, %v771
    %805 = vmatprep.subr.bf16.mxu0 0
    %806 = vmatpush1.bf16.msra.mxu0 %v773
    %807 = vmatprep.subr.bf16.mxu0 0
    %808 = vmatpush1.bf16.msra.mxu0 %v774
    %809 = vmatprep.subr.bf16.mxu0 0
    %810 = vmatpush1.bf16.msra.mxu0 %v775
    %811 = vmatprep.subr.bf16.mxu0 0
    %812 = vmatpush1.bf16.msra.mxu0 %v776
    %813 = vmatprep.subr.bf16.mxu0 0
    %814 = vmatpush1.bf16.msra.mxu0 %v777
    %815 = vmatprep.subr.bf16.mxu0 0
    %816 = vmatpush1.bf16.msra.mxu0 %v778
    %817 = vmatprep.subr.bf16.mxu0 0
    %818 = vmatpush1.bf16.msra.mxu0 %v779
    %819 = vmatprep.subr.bf16.mxu0 0
    %820 = vmatpush1.bf16.msra.mxu0 %v780
    %821 = vmatprep.subr.bf16.mxu0 0
    %822 = vmatpush1.bf16.msra.mxu0 %v781
    %823 = vmatprep.subr.bf16.mxu0 0
    %824 = vmatpush1.bf16.msra.mxu0 %v782
    %825 = vmatprep.subr.bf16.mxu0 0
    %826 = vmatpush1.bf16.msra.mxu0 %v783
    %827 = vmatprep.subr.bf16.mxu0 0
    %828 = vmatpush1.bf16.msra.mxu0 %v784
    %829 = vmatprep.subr.bf16.mxu0 0
    %830 = vmatpush1.bf16.msra.mxu0 %v785
    %831 = vmatprep.subr.bf16.mxu0 0
    %832 = vmatpush1.bf16.msra.mxu0 %v786
    %833 = vmatprep.subr.bf16.mxu0 0
    %834 = vmatpush1.bf16.msra.mxu0 %v787
    %835 = vmatprep.subr.bf16.mxu0 0
    %836 = vmatpush1.bf16.msra.mxu0 %v788
    %837 = vmatprep.mubr.bf16.mxu0 %v676
    %838 = vmatmul.mubr.bf16.gmra.mrb[0].mxu0 %v675
    %v839 = vpop.f32.mrb[0].mxu0
    %v840 = vadd.f32 0.0, %v839
    %v841 = vpop.f32.mrb[0].mxu0
    %v842 = vpop.f32.mrb[0].mxu0
    %v843 = vpop.f32.mrb[0].mxu0
    %844 = vdwg.mxu0
    %v845 = vld [vmem:[#allocation10 + $0x6] ss:$0 sm:$0xff]
    %v846 = vld [vmem:[#allocation10 + $0x7] ss:$0 sm:$0xff]
    %v847 = vrot.slane %v840, 4
    %v848 = vadd.f32 %v840, %v847
    %v849 = vrot.slane %v848, 2
    %v850 = vadd.f32 %v848, %v849
    %v851 = vrot.slane %v850, 1
    %v852 = vadd.f32 %v850, %v851
    %v853 = vmul.f32 %v852, 0.125
    %v854 = vmul.f32 %v840, %v840
    %v855 = vrot.slane %v854, 4
    %v856 = vadd.f32 %v854, %v855
    %v857 = vrot.slane %v856, 2
    %v858 = vadd.f32 %v856, %v857
    %v859 = vrot.slane %v858, 1
    %v860 = vadd.f32 %v858, %v859
    %v861 = vmul.f32 %v860, 0.125
    %v862 = vmul.f32 %v853, %v853
    %v863 = vsub.f32 %v861, %v862
    %v864 = vadd.f32 %v863, 1e-05
    %v865 = vrsqrt.pop %v864
    %v866 = vmul.f32 %v845, %v865
    %v867 = vmul.f32 %v853, %v866
    %v868 = vsub.f32 %v846, %v867
    %v869 = vmul.f32 %v840, %v866
    %v870 = vadd.f32 %v869, %v868
    %v871 = vmax.f32 %v870, 0.0
    %v872 = vpack.c.bf16 %v871, %v871
    %v873 = vld [vmem:[#allocation8] sm:$0xf]
    %v874 = vld [vmem:[#allocation8 + $0x4] sm:$0xf]
    %v875 = vld [vmem:[#allocation8 + $0x8] sm:$0xf]
    %v876 = vld [vmem:[#allocation8 + $0xc] sm:$0xf]
    %v877 = vld [vmem:[#allocation8 + $0x10] sm:$0xf]
    %v878 = vld [vmem:[#allocation8 + $0x14] sm:$0xf]
    %v879 = vld [vmem:[#allocation8 + $0x18] sm:$0xf]
    %v880 = vld [vmem:[#allocation8 + $0x1c] sm:$0xf]
    %v881 = vld [vmem:[#allocation8 + $0x20] sm:$0xf]
    %v882 = vld [vmem:[#allocation8 + $0x24] sm:$0xf]
    %v883 = vld [vmem:[#allocation8 + $0x28] sm:$0xf]
    %v884 = vld [vmem:[#allocation8 + $0x2c] sm:$0xf]
    %v885 = vld [vmem:[#allocation8 + $0x30] sm:$0xf]
    %v886 = vld [vmem:[#allocation8 + $0x34] sm:$0xf]
    %v887 = vld [vmem:[#allocation8 + $0x38] sm:$0xf]
    %v888 = vld [vmem:[#allocation8 + $0x3c] sm:$0xf]
    %v889 = vld [vmem:[#allocation10 + $0x10] ss:$0 sm:$0xff]
    %v906 = vunpack.c.l.b16 %v873
    %v907 = vunpack.c.l.b16 %v874
    %v908 = vunpack.c.l.b16 %v875
    %v909 = vunpack.c.l.b16 %v876
    %v910 = vunpack.c.l.b16 %v877
    %v911 = vunpack.c.l.b16 %v878
    %v912 = vunpack.c.l.b16 %v879
    %v913 = vunpack.c.l.b16 %v880
    %v914 = vunpack.c.l.b16 %v881
    %v915 = vunpack.c.l.b16 %v882
    %v916 = vunpack.c.l.b16 %v883
    %v917 = vunpack.c.l.b16 %v884
    %v918 = vunpack.c.l.b16 %v885
    %v919 = vunpack.c.l.b16 %v886
    %v920 = vunpack.c.l.b16 %v887
    %v921 = vunpack.c.l.b16 %v888
    %v922 = vpack.c.b16 %v907, %v906
    %v923 = vpack.c.b16 %v909, %v908
    %v924 = vpack.c.b16 %v911, %v910
    %v925 = vpack.c.b16 %v913, %v912
    %v926 = vpack.c.b16 %v915, %v914
    %v927 = vpack.c.b16 %v917, %v916
    %v928 = vpack.c.b16 %v919, %v918
    %v929 = vpack.c.b16 %v921, %v920
    %938 = vmatprep.subr.bf16.mxu0 0
    %939 = vmatpush1.bf16.msra.mxu0 %v922
    %940 = vmatprep.subr.bf16.mxu0 0
    %941 = vmatpush1.bf16.msra.mxu0 %v923
    %942 = vmatprep.subr.bf16.mxu0 0
    %943 = vmatpush1.bf16.msra.mxu0 %v924
    %944 = vmatprep.subr.bf16.mxu0 0
    %945 = vmatpush1.bf16.msra.mxu0 %v925
    %946 = vmatprep.subr.bf16.mxu0 0
    %947 = vmatpush1.bf16.msra.mxu0 %v926
    %948 = vmatprep.subr.bf16.mxu0 0
    %949 = vmatpush1.bf16.msra.mxu0 %v927
    %950 = vmatprep.subr.bf16.mxu0 0
    %951 = vmatpush1.bf16.msra.mxu0 %v928
    %952 = vmatprep.subr.bf16.mxu0 0
    %953 = vmatpush1.bf16.msra.mxu0 %v929
    %954 = vmatprep.subr.bf16.mxu0 0
    %955 = vmatpush1.bf16.msra.mxu0 0
    %956 = vmatprep.subr.bf16.mxu0 0
    %957 = vmatpush1.bf16.msra.mxu0 0
    %958 = vmatprep.subr.bf16.mxu0 0
    %959 = vmatpush1.bf16.msra.mxu0 0
    %960 = vmatprep.subr.bf16.mxu0 0
    %961 = vmatpush1.bf16.msra.mxu0 0
    %962 = vmatprep.subr.bf16.mxu0 0
    %963 = vmatpush1.bf16.msra.mxu0 0
    %964 = vmatprep.subr.bf16.mxu0 0
    %965 = vmatpush1.bf16.msra.mxu0 0
    %966 = vmatprep.subr.bf16.mxu0 0
    %967 = vmatpush1.bf16.msra.mxu0 0
    %968 = vmatprep.subr.bf16.mxu0 0
    %969 = vmatpush1.bf16.msra.mxu0 0
    %970 = vmatprep.mubr.bf16.mxu0 0
    %971 = vmatmul.mubr.bf16.gmra.mrb[0].mxu0 %v872
    %v972 = vpop.f32.mrb[0].mxu0
    %v973 = vadd.f32 %v889, %v972
    %v974 = vpop.f32.mrb[0].mxu0
    %v975 = vpop.f32.mrb[0].mxu0
    %v976 = vpop.f32.mrb[0].mxu0
    %977 = vdwg.mxu0
    %978 = vst [vmem:[#allocation11] sm:$0xff] %v973
    // Predicated region
    $region50: #{model_clf_forward.1} parent=1 // pred_check
      _
    $region51: #{model_clf_forward.1} parent=1 // pred_check_branch
      %980 = sbr.rel (0) target = $region53
    $region52: #{model_clf_forward.1} parent=1 // pred_region
      %s982 = ssub.s32 128, 128
      %983 = vsyncadd [#allocation4], %s982
      %s985 = sshll.u32 [#allocation11], 4
      %s986 = int_to_ptr.vmem [resolvable:$true] %s985
      %988 = dma.vmem_to_hbm [thread:$0]  %s986, 128, %s7, [#allocation4]
    $region53: #{model_clf_forward.1} parent=1 // pred_fallthru
      _
    // Predicated region
    $region54: #{model_clf_forward.1} parent=1 // pred_check
      _
    $region55: #{model_clf_forward.1} parent=1 // pred_check_branch
      %990 = sbr.rel (0) target = $region57
    $region56: #{model_clf_forward.1} parent=1 // pred_region
      %991 = dma.done [#allocation4], 128
    $region57: #{model_clf_forward.1} parent=1 // pred_fallthru
      _
    %992 = vsyncpa [#allocation3], 1
    %993 = vsyncpa [#allocation6], 1
    %994 = vsyncpa [#allocation9], 1
    %995 = vsyncpa [#allocation4], 1

</llo_original>
